<compile_context>
chip_gen: v5e
topology: v5e:2x2
jax: 0.10.0
libtpu: 0.0.40
codegen_flags: <defaults>
</compile_context>

<pallas_src>
import functools

import jax
import jax.numpy as jnp
import numpy as np
from jax.experimental import pallas as pl
from jax.experimental.pallas import tpu as pltpu


def _log_sigmoid(x):
    # numerically stable log(sigmoid(x)) = min(x, 0) - log(1 + exp(-|x|))
    return jnp.minimum(x, 0.0) - jnp.log1p(jnp.exp(-jnp.abs(x)))


def _round_up(x, m):
    return ((x + m - 1) // m) * m


# --------------------------------------------------------------------------------------
# Primary kernel: embedding tables resident in VMEM, gather via one-hot matmul on the MXU.
# --------------------------------------------------------------------------------------
def _skipgram_vmem_kernel(cen_ref, con_ref, neg_ref,      # int32 index tiles (VMEM)
                          in_tab_ref, out_tab_t_ref,      # (V, D) and (D, V) tables
                          out_ref,                        # (1, 1, 1) per-tile partial sum
                          *, tb, n_ctx, n_neg, batch, vocab):
    base = pl.program_id(0) * tb
    f32 = jnp.float32

    in_tab = in_tab_ref[...].astype(f32)         # (V, D)
    out_tab_t = out_tab_t_ref[...].astype(f32)   # (D, V)

    # lane iota over the vocabulary, reused by every one-hot / count-mask build
    lane_v = jax.lax.broadcasted_iota(jnp.int32, (tb, vocab), 1)

    # center embeddings as an exact one-hot gather on the (otherwise idle) MXU
    onehot_c = (lane_v == cen_ref[...]).astype(f32)                     # (tb, V)
    c = jnp.dot(onehot_c, in_tab, preferred_element_type=f32)           # (tb, D)

    # score matrix s[b, v] = c[b] . out_embed[v]   (one MXU matmul per tile)
    s = jnp.dot(c, out_tab_t, preferred_element_type=f32)               # (tb, V)

    # per-row index-count masks (duplicates counted exactly); small static P / N unrolls
    con = con_ref[...]                                                  # (tb, P) int32
    neg = neg_ref[...]                                                  # (tb, N) int32
    h_p = jnp.zeros((tb, vocab), f32)
    for j in range(n_ctx):
        h_p = h_p + (lane_v == con[:, j:j + 1]).astype(f32)
    h_n = jnp.zeros((tb, vocab), f32)
    for k in range(n_neg):
        h_n = h_n + (lane_v == neg[:, k:k + 1]).astype(f32)

    p_logit = jnp.sum(h_p * s, axis=-1, keepdims=True)                  # (tb, 1)
    p_score = _log_sigmoid(p_logit)                                     # (tb, 1)
    n_score = jnp.sum(h_n * _log_sigmoid(-s), axis=-1, keepdims=True)   # (tb, 1)

    # mask rows past the true batch size (padding of the last tile)
    row = jax.lax.broadcasted_iota(jnp.int32, (tb, 1), 0)
    contrib = jnp.where((base + row) < batch, p_score + n_score, 0.0)

    # per-tile partial sum; final loss = -(sum over all tiles) in the wrapper
    out_ref[...] = jnp.sum(contrib).reshape(1, 1, 1)


# --------------------------------------------------------------------------------------
# Fallback kernel: tables stay in HBM, fused per-row DMA gather (large vocabularies).
# --------------------------------------------------------------------------------------
def _skipgram_hbm_kernel(cen_ref, con_ref, neg_ref,       # scalar-prefetch (SMEM, int32)
                         in_emb_hbm, out_emb_hbm,         # HBM refs (memory_space=pl.ANY)
                         out_ref,                         # (1, 1, 1) per-tile partial sum
                         cbuf, pbuf, nbuf, sem,           # VMEM scratch + 3-sem pool
                         *, tb, n_ctx, n_neg, batch):
    base = pl.program_id(0) * tb

    # ---- fused gather: one DMA per embedding row, looped (not unrolled) ---------------
    # All (1 + P + N) * tb row copies are issued before the first wait so they overlap.
    @pl.loop(0, tb)
    def _(r):
        b = base + r
        pltpu.make_async_copy(in_emb_hbm.at[pl.ds(cen_ref[b], 1), :],
                              cbuf.at[pl.ds(r, 1), :], sem.at[0]).start()
        for j in range(n_ctx):
            pltpu.make_async_copy(out_emb_hbm.at[pl.ds(con_ref[b * n_ctx + j], 1), :],
                                  pbuf.at[j, pl.ds(r, 1), :], sem.at[1]).start()
        for k in range(n_neg):
            pltpu.make_async_copy(out_emb_hbm.at[pl.ds(neg_ref[b * n_neg + k], 1), :],
                                  nbuf.at[k, pl.ds(r, 1), :], sem.at[2]).start()

    # Drain a semaphore: one wait per issued row copy.  All copies on a given semaphore
    # have the same (1, D) shape, so a fixed-shape descriptor drains exactly one copy per
    # wait regardless of completion order (a wait only needs shape + semaphore).
    def drain(sem_ref, row_view, count):
        @pl.loop(0, count)
        def _(_i):
            pltpu.make_async_copy(row_view, row_view, sem_ref).wait()

    # staged waits: centre + context rows first, so the negative-row gathers overlap the
    # positive-path compute below.
    drain(sem.at[0], cbuf.at[pl.ds(0, 1), :], tb)
    drain(sem.at[1], pbuf.at[0, pl.ds(0, 1), :], tb * n_ctx)

    c = cbuf[...].astype(jnp.float32)                                    # (tb, D)
    p_sum = pbuf[0].astype(jnp.float32)                                  # (tb, D)
    for j in range(1, n_ctx):
        p_sum = p_sum + pbuf[j].astype(jnp.float32)
    p_score = _log_sigmoid(jnp.sum(p_sum * c, axis=-1, keepdims=True))   # (tb, 1)

    drain(sem.at[2], nbuf.at[0, pl.ds(0, 1), :], tb * n_neg)
    n_score = jnp.zeros((tb, 1), jnp.float32)
    for k in range(n_neg):
        n_dot = jnp.sum(nbuf[k].astype(jnp.float32) * c, axis=-1, keepdims=True)
        n_score = n_score + _log_sigmoid(-n_dot)                         # (tb, 1)

    row = jax.lax.broadcasted_iota(jnp.int32, (tb, 1), 0)
    contrib = jnp.where((base + row) < batch, p_score + n_score, 0.0)
    out_ref[...] = jnp.sum(contrib).reshape(1, 1, 1)


# --------------------------------------------------------------------------------------
# Wrapper
# --------------------------------------------------------------------------------------
def skipgram_loss(in_embed, out_embed, cen_word, con_word, neg_word, *,
                  tb=None, force_hbm_gather=False):
    """Forward pass of SkipGram. Returns loss of shape (1,), like the torch module."""
    batch = int(cen_word.shape[0])
    n_ctx = int(con_word.shape[1])
    n_neg = int(neg_word.shape[1])
    vocab, emb_dim = int(in_embed.shape[0]), int(in_embed.shape[1])

    # ---- choose gather strategy + batch-tile size --------------------------------------
    vmem_budget = 32 * 1024 * 1024   # explicit scoped-VMEM request; safe on v5e/v6e/v7x
    dt_bytes = jnp.dtype(in_embed.dtype).itemsize + jnp.dtype(out_embed.dtype).itemsize
    table_bytes = vocab * emb_dim * dt_bytes
    # tables are double-buffered by the input pipeline (2x); keep them within half the
    # budget and leave the other half for the (tb, vocab) f32 intermediates.
    use_vmem_tables = (not force_hbm_gather) and (2 * table_bytes) <= vmem_budget // 2

    if tb is None:
        if use_vmem_tables:
            # big tiles amortize per-step overhead; cap so ~6 live (tb, vocab) f32
            # intermediates fit in the remaining half of the VMEM budget.
            cap = (vmem_budget // 2) // (6 * 4 * vocab)
            tb = min(256, max(8, cap))
        else:
            # HBM row-gather path: tile bounded by in-flight row-DMA count, not VMEM.
            tb = 16
    tb = max(8, _round_up(min(tb, batch), 8))   # f32 sublane alignment (use 16 for bf16)
    num_tiles = (batch + tb - 1) // tb          # v7x: ideally >= 2 tiles so both TCs work
    b_pad = num_tiles * tb

    if use_vmem_tables:
        def pad_rows(x):
            if x.shape[0] == b_pad:
                return x
            fill = jnp.zeros((b_pad - x.shape[0],) + x.shape[1:], jnp.int32)
            return jnp.concatenate([x, fill], axis=0)

        cen2d = pad_rows(cen_word.reshape(batch, 1).astype(jnp.int32))
        con2d = pad_rows(con_word.astype(jnp.int32))
        neg2d = pad_rows(neg_word.astype(jnp.int32))
        out_tab_t = out_embed.T     # (D, V): score matmul becomes a plain NN matmul

        kernel = functools.partial(_skipgram_vmem_kernel, tb=tb, n_ctx=n_ctx,
                                   n_neg=n_neg, batch=batch, vocab=vocab)
        partials = pl.pallas_call(
            kernel,
            out_shape=jax.ShapeDtypeStruct((num_tiles, 1, 1), jnp.float32),
            grid=(num_tiles,),
            in_specs=[
                pl.BlockSpec((tb, 1), lambda i: (i, 0)),            # center indices
                pl.BlockSpec((tb, n_ctx), lambda i: (i, 0)),        # context indices
                pl.BlockSpec((tb, n_neg), lambda i: (i, 0)),        # negative indices
                pl.BlockSpec((vocab, emb_dim), lambda i: (0, 0)),   # in_embed    (resident)
                pl.BlockSpec((emb_dim, vocab), lambda i: (0, 0)),   # out_embed^T (resident)
            ],
            out_specs=pl.BlockSpec((1, 1, 1), lambda i: (i, 0, 0)),
            compiler_params=pltpu.CompilerParams(
                dimension_semantics=("parallel",),
                vmem_limit_bytes=vmem_budget),
        )(cen2d, con2d, neg2d, in_embed, out_tab_t)
    else:
        def pad_flat(x, n):
            if x.shape[0] == n:
                return x
            return jnp.concatenate([x, jnp.zeros((n - x.shape[0],), jnp.int32)])

        cen_f = pad_flat(cen_word.reshape(-1).astype(jnp.int32), b_pad)
        con_f = pad_flat(con_word.reshape(-1).astype(jnp.int32), b_pad * n_ctx)
        neg_f = pad_flat(neg_word.reshape(-1).astype(jnp.int32), b_pad * n_neg)

        kernel = functools.partial(_skipgram_hbm_kernel, tb=tb, n_ctx=n_ctx,
                                   n_neg=n_neg, batch=batch)
        partials = pl.pallas_call(
            kernel,
            out_shape=jax.ShapeDtypeStruct((num_tiles, 1, 1), jnp.float32),
            grid_spec=pltpu.PrefetchScalarGridSpec(
                num_scalar_prefetch=3,
                grid=(num_tiles,),
                in_specs=[
                    pl.BlockSpec(memory_space=pl.ANY),   # in_embed  stays in HBM
                    pl.BlockSpec(memory_space=pl.ANY),   # out_embed stays in HBM
                ],
                out_specs=pl.BlockSpec((1, 1, 1), lambda i, *_: (i, 0, 0)),
                scratch_shapes=[
                    pltpu.VMEM((tb, emb_dim), in_embed.dtype),           # center rows
                    pltpu.VMEM((n_ctx, tb, emb_dim), out_embed.dtype),   # context rows
                    pltpu.VMEM((n_neg, tb, emb_dim), out_embed.dtype),   # negative rows
                    pltpu.SemaphoreType.DMA((3,)),                       # c / ctx / neg
                ]),
            compiler_params=pltpu.CompilerParams(
                dimension_semantics=("parallel",),
                vmem_limit_bytes=vmem_budget),
        )(cen_f, con_f, neg_f, in_embed, out_embed)

    # torch's (B,1)+(B,) broadcasting + mean collapses to -(sum p_score + sum n_score)
    return (-jnp.sum(partials)).reshape(1)


def skipgram_loss_ref(in_embed, out_embed, cen_word, con_word, neg_word):
    """Pure-JAX reference mirroring the torch code line by line (incl. broadcasting)."""
    c = in_embed[cen_word]                            # (B, D)
    p = out_embed[con_word]                           # (B, P, D)
    n = out_embed[neg_word]                           # (B, N, D)
    p_score = jnp.einsum('bpd,bd->bp', p, c)
    p_score = jax.nn.log_sigmoid(jnp.sum(p_score, axis=1)[:, None])   # (B, 1)
    n_score = jnp.einsum('bnd,bd->bn', n, c)
    n_score = jnp.sum(jax.nn.log_sigmoid(-n_score), axis=1)           # (B,)
    combine = jnp.sum(p_score + n_score, axis=1)      # (B,1)+(B,) -> (B,B) -> (B,)
    return (-jnp.mean(combine))[None]


if __name__ == "__main__":
    vocab_size = 100
    embedding_dim = 128     # lane-dense: one embedding row == one full vreg lane row
    batch = 40
    n_context = 4
    n_neg = 8

    key = jax.random.PRNGKey(0)
    k_in, k_out, k_cen, k_con, k_neg = jax.random.split(key, 5)

    initrange = 0.5 / embedding_dim
    in_embed = jax.random.uniform(
        k_in, (vocab_size, embedding_dim), jnp.float32, -initrange, initrange)
    # NOTE: the module's init_emb() sets out_embed to uniform_(-0, 0) == zeros; use a
    # small deterministic uniform instead so the kernel computes non-trivial values.
    out_embed = jax.random.uniform(
        k_out, (vocab_size, embedding_dim), jnp.float32, -initrange, initrange)

    cen_word = jax.random.randint(k_cen, (batch,), 0, vocab_size, jnp.int32)
    con_word = jax.random.randint(k_con, (batch, n_context), 0, vocab_size, jnp.int32)
    neg_word = jax.random.randint(k_neg, (batch, n_neg), 0, vocab_size, jnp.int32)

    loss_ref = jax.block_until_ready(
        skipgram_loss_ref(in_embed, out_embed, cen_word, con_word, neg_word))

    # Primary path: tables resident in VMEM, one-hot/MXU gather, single 40-row tile.
    loss_vmem = jax.block_until_ready(
        skipgram_loss(in_embed, out_embed, cen_word, con_word, neg_word))
    np.testing.assert_allclose(np.asarray(loss_vmem), np.asarray(loss_ref),
                               rtol=2e-5, atol=1e-3)

    # Same path, multi-tile + padded-row masking (batch=40, tb=16 -> 3 tiles, 8 pad rows).
    loss_tiled = jax.block_until_ready(
        skipgram_loss(in_embed, out_embed, cen_word, con_word, neg_word, tb=16))
    np.testing.assert_allclose(np.asarray(loss_tiled), np.asarray(loss_ref),
                               rtol=2e-5, atol=1e-3)

    # Fallback path (exercised here on small shapes): HBM tables + fused DMA row gather.
    loss_hbm = jax.block_until_ready(
        skipgram_loss(in_embed, out_embed, cen_word, con_word, neg_word,
                      force_hbm_gather=True))
    np.testing.assert_allclose(np.asarray(loss_hbm), np.asarray(loss_ref),
                               rtol=2e-5, atol=1e-3)

    print("KERNEL_OK")
</pallas_src>

<mosaic_0001>
module attributes {stable_mosaic.version = 11 : i64} {
  func.func @_skipgram_vmem_kernel(%arg0: i32, %arg1: memref<40x1xi32, #tpu.memory_space<vmem>>, %arg2: memref<40x4xi32, #tpu.memory_space<vmem>>, %arg3: memref<40x8xi32, #tpu.memory_space<vmem>>, %arg4: memref<100x128xf32, #tpu.memory_space<vmem>>, %arg5: memref<128x100xf32, #tpu.memory_space<vmem>>, %arg6: memref<1x1x1xf32, #tpu.memory_space<vmem>>) attributes {dimension_semantics = [#tpu.dimension_semantics<parallel>], iteration_bounds = array<i64: 1>, scalar_prefetch = 0 : i64, scratch_operands = 0 : i64, tpu.core_type = #tpu.core_type<tc>, window_params = [{transform_indices = @transform_0, window_bounds = array<i64: 40, 1>}, {transform_indices = @transform_1, window_bounds = array<i64: 40, 4>}, {transform_indices = @transform_2, window_bounds = array<i64: 40, 8>}, {pipeline_mode = #tpu.pipeline_mode<synchronous>, transform_indices = @transform_3, window_bounds = array<i64: 100, 128>}, {pipeline_mode = #tpu.pipeline_mode<synchronous>, transform_indices = @transform_4, window_bounds = array<i64: 128, 100>}, {transform_indices = @transform_5, window_bounds = array<i64: 1, 1, 1>}]} {
    %c40_i32 = arith.constant 40 : i32
    %0 = arith.muli %arg0, %c40_i32 : i32
    %c0 = arith.constant 0 : index
    %c0_0 = arith.constant 0 : index
    %1 = vector.load %arg4[%c0, %c0_0] : memref<100x128xf32, #tpu.memory_space<vmem>>, vector<100x128xf32>
    %c0_1 = arith.constant 0 : index
    %c0_2 = arith.constant 0 : index
    %2 = vector.load %arg5[%c0_1, %c0_2] : memref<128x100xf32, #tpu.memory_space<vmem>>, vector<128x100xf32>
    %3 = tpu.iota {dimensions = array<i32: 1>} : vector<40x100xi32>
    %c0_3 = arith.constant 0 : index
    %c0_4 = arith.constant 0 : index
    %4 = vector.load %arg1[%c0_3, %c0_4] : memref<40x1xi32, #tpu.memory_space<vmem>>, vector<40x1xi32>
    %5 = vector.broadcast %4 : vector<40x1xi32> to vector<40x100xi32>
    %6 = arith.cmpi eq, %3, %5 : vector<40x100xi32>
    %7 = arith.extui %6 : vector<40x100xi1> to vector<40x100xi32>
    %8 = arith.sitofp %7 : vector<40x100xi32> to vector<40x100xf32>
    %cst = arith.constant dense<0.000000e+00> : vector<40x128xf32>
    %9 = tpu.matmul %8, %1, %cst {dimension_numbers = #tpu.dot_dimension_numbers<[1], [0], [0], [1], [0, 0, 1, 1], [], []>} : vector<40x100xf32>, vector<100x128xf32>, vector<40x128xf32> -> vector<40x128xf32>
    %cst_5 = arith.constant dense<0.000000e+00> : vector<40x100xf32>
    %10 = tpu.matmul %9, %2, %cst_5 {dimension_numbers = #tpu.dot_dimension_numbers<[1], [0], [0], [1], [0, 0, 1, 1], [], []>} : vector<40x128xf32>, vector<128x100xf32>, vector<40x100xf32> -> vector<40x100xf32>
    %c0_6 = arith.constant 0 : index
    %c0_7 = arith.constant 0 : index
    %11 = vector.load %arg2[%c0_6, %c0_7] : memref<40x4xi32, #tpu.memory_space<vmem>>, vector<40x4xi32>
    %c0_8 = arith.constant 0 : index
    %c0_9 = arith.constant 0 : index
    %12 = vector.load %arg3[%c0_8, %c0_9] : memref<40x8xi32, #tpu.memory_space<vmem>>, vector<40x8xi32>
    %cst_10 = arith.constant 0.000000e+00 : f32
    %13 = vector.broadcast %cst_10 : f32 to vector<40x100xf32>
    %14 = vector.extract_strided_slice %11 {offsets = [0, 0], sizes = [40, 1], strides = [1, 1]} : vector<40x4xi32> to vector<40x1xi32>
    %15 = vector.broadcast %14 : vector<40x1xi32> to vector<40x100xi32>
    %16 = arith.cmpi eq, %3, %15 : vector<40x100xi32>
    %17 = arith.extui %16 : vector<40x100xi1> to vector<40x100xi32>
    %18 = arith.sitofp %17 : vector<40x100xi32> to vector<40x100xf32>
    %19 = arith.addf %13, %18 : vector<40x100xf32>
    %20 = vector.extract_strided_slice %11 {offsets = [0, 1], sizes = [40, 1], strides = [1, 1]} : vector<40x4xi32> to vector<40x1xi32>
    %21 = vector.broadcast %20 : vector<40x1xi32> to vector<40x100xi32>
    %22 = arith.cmpi eq, %3, %21 : vector<40x100xi32>
    %23 = arith.extui %22 : vector<40x100xi1> to vector<40x100xi32>
    %24 = arith.sitofp %23 : vector<40x100xi32> to vector<40x100xf32>
    %25 = arith.addf %19, %24 : vector<40x100xf32>
    %26 = vector.extract_strided_slice %11 {offsets = [0, 2], sizes = [40, 1], strides = [1, 1]} : vector<40x4xi32> to vector<40x1xi32>
    %27 = vector.broadcast %26 : vector<40x1xi32> to vector<40x100xi32>
    %28 = arith.cmpi eq, %3, %27 : vector<40x100xi32>
    %29 = arith.extui %28 : vector<40x100xi1> to vector<40x100xi32>
    %30 = arith.sitofp %29 : vector<40x100xi32> to vector<40x100xf32>
    %31 = arith.addf %25, %30 : vector<40x100xf32>
    %32 = vector.extract_strided_slice %11 {offsets = [0, 3], sizes = [40, 1], strides = [1, 1]} : vector<40x4xi32> to vector<40x1xi32>
    %33 = vector.broadcast %32 : vector<40x1xi32> to vector<40x100xi32>
    %34 = arith.cmpi eq, %3, %33 : vector<40x100xi32>
    %35 = arith.extui %34 : vector<40x100xi1> to vector<40x100xi32>
    %36 = arith.sitofp %35 : vector<40x100xi32> to vector<40x100xf32>
    %37 = arith.addf %31, %36 : vector<40x100xf32>
    %cst_11 = arith.constant 0.000000e+00 : f32
    %38 = vector.broadcast %cst_11 : f32 to vector<40x100xf32>
    %39 = vector.extract_strided_slice %12 {offsets = [0, 0], sizes = [40, 1], strides = [1, 1]} : vector<40x8xi32> to vector<40x1xi32>
    %40 = vector.broadcast %39 : vector<40x1xi32> to vector<40x100xi32>
    %41 = arith.cmpi eq, %3, %40 : vector<40x100xi32>
    %42 = arith.extui %41 : vector<40x100xi1> to vector<40x100xi32>
    %43 = arith.sitofp %42 : vector<40x100xi32> to vector<40x100xf32>
    %44 = arith.addf %38, %43 : vector<40x100xf32>
    %45 = vector.extract_strided_slice %12 {offsets = [0, 1], sizes = [40, 1], strides = [1, 1]} : vector<40x8xi32> to vector<40x1xi32>
    %46 = vector.broadcast %45 : vector<40x1xi32> to vector<40x100xi32>
    %47 = arith.cmpi eq, %3, %46 : vector<40x100xi32>
    %48 = arith.extui %47 : vector<40x100xi1> to vector<40x100xi32>
    %49 = arith.sitofp %48 : vector<40x100xi32> to vector<40x100xf32>
    %50 = arith.addf %44, %49 : vector<40x100xf32>
    %51 = vector.extract_strided_slice %12 {offsets = [0, 2], sizes = [40, 1], strides = [1, 1]} : vector<40x8xi32> to vector<40x1xi32>
    %52 = vector.broadcast %51 : vector<40x1xi32> to vector<40x100xi32>
    %53 = arith.cmpi eq, %3, %52 : vector<40x100xi32>
    %54 = arith.extui %53 : vector<40x100xi1> to vector<40x100xi32>
    %55 = arith.sitofp %54 : vector<40x100xi32> to vector<40x100xf32>
    %56 = arith.addf %50, %55 : vector<40x100xf32>
    %57 = vector.extract_strided_slice %12 {offsets = [0, 3], sizes = [40, 1], strides = [1, 1]} : vector<40x8xi32> to vector<40x1xi32>
    %58 = vector.broadcast %57 : vector<40x1xi32> to vector<40x100xi32>
    %59 = arith.cmpi eq, %3, %58 : vector<40x100xi32>
    %60 = arith.extui %59 : vector<40x100xi1> to vector<40x100xi32>
    %61 = arith.sitofp %60 : vector<40x100xi32> to vector<40x100xf32>
    %62 = arith.addf %56, %61 : vector<40x100xf32>
    %63 = vector.extract_strided_slice %12 {offsets = [0, 4], sizes = [40, 1], strides = [1, 1]} : vector<40x8xi32> to vector<40x1xi32>
    %64 = vector.broadcast %63 : vector<40x1xi32> to vector<40x100xi32>
    %65 = arith.cmpi eq, %3, %64 : vector<40x100xi32>
    %66 = arith.extui %65 : vector<40x100xi1> to vector<40x100xi32>
    %67 = arith.sitofp %66 : vector<40x100xi32> to vector<40x100xf32>
    %68 = arith.addf %62, %67 : vector<40x100xf32>
    %69 = vector.extract_strided_slice %12 {offsets = [0, 5], sizes = [40, 1], strides = [1, 1]} : vector<40x8xi32> to vector<40x1xi32>
    %70 = vector.broadcast %69 : vector<40x1xi32> to vector<40x100xi32>
    %71 = arith.cmpi eq, %3, %70 : vector<40x100xi32>
    %72 = arith.extui %71 : vector<40x100xi1> to vector<40x100xi32>
    %73 = arith.sitofp %72 : vector<40x100xi32> to vector<40x100xf32>
    %74 = arith.addf %68, %73 : vector<40x100xf32>
    %75 = vector.extract_strided_slice %12 {offsets = [0, 6], sizes = [40, 1], strides = [1, 1]} : vector<40x8xi32> to vector<40x1xi32>
    %76 = vector.broadcast %75 : vector<40x1xi32> to vector<40x100xi32>
    %77 = arith.cmpi eq, %3, %76 : vector<40x100xi32>
    %78 = arith.extui %77 : vector<40x100xi1> to vector<40x100xi32>
    %79 = arith.sitofp %78 : vector<40x100xi32> to vector<40x100xf32>
    %80 = arith.addf %74, %79 : vector<40x100xf32>
    %81 = vector.extract_strided_slice %12 {offsets = [0, 7], sizes = [40, 1], strides = [1, 1]} : vector<40x8xi32> to vector<40x1xi32>
    %82 = vector.broadcast %81 : vector<40x1xi32> to vector<40x100xi32>
    %83 = arith.cmpi eq, %3, %82 : vector<40x100xi32>
    %84 = arith.extui %83 : vector<40x100xi1> to vector<40x100xi32>
    %85 = arith.sitofp %84 : vector<40x100xi32> to vector<40x100xf32>
    %86 = arith.addf %80, %85 : vector<40x100xf32>
    %87 = arith.mulf %37, %10 : vector<40x100xf32>
    %cst_12 = arith.constant dense<0.000000e+00> : vector<40xf32>
    %88 = vector.multi_reduction <add>, %87, %cst_12 [1] : vector<40x100xf32> to vector<40xf32>
    %89 = vector.shape_cast %88 : vector<40xf32> to vector<40x1xf32>
    %cst_13 = arith.constant 0.000000e+00 : f32
    %90 = vector.broadcast %cst_13 : f32 to vector<40x1xf32>
    %91 = arith.minimumf %89, %90 : vector<40x1xf32>
    %92 = math.absf %89 : vector<40x1xf32>
    %cst_14 = arith.constant 0.000000e+00 : f32
    %93 = vector.broadcast %cst_14 : f32 to vector<40x1xf32>
    %94 = arith.subf %93, %92 : vector<40x1xf32>
    %95 = math.exp %94 : vector<40x1xf32>
    %96 = math.log1p %95 : vector<40x1xf32>
    %97 = arith.subf %91, %96 : vector<40x1xf32>
    %cst_15 = arith.constant 0.000000e+00 : f32
    %98 = vector.broadcast %cst_15 : f32 to vector<40x100xf32>
    %99 = arith.subf %98, %10 : vector<40x100xf32>
    %cst_16 = arith.constant 0.000000e+00 : f32
    %100 = vector.broadcast %cst_16 : f32 to vector<40x100xf32>
    %101 = arith.minimumf %99, %100 : vector<40x100xf32>
    %102 = math.absf %99 : vector<40x100xf32>
    %cst_17 = arith.constant 0.000000e+00 : f32
    %103 = vector.broadcast %cst_17 : f32 to vector<40x100xf32>
    %104 = arith.subf %103, %102 : vector<40x100xf32>
    %105 = math.exp %104 : vector<40x100xf32>
    %106 = math.log1p %105 : vector<40x100xf32>
    %107 = arith.subf %101, %106 : vector<40x100xf32>
    %108 = arith.mulf %86, %107 : vector<40x100xf32>
    %cst_18 = arith.constant dense<0.000000e+00> : vector<40xf32>
    %109 = vector.multi_reduction <add>, %108, %cst_18 [1] : vector<40x100xf32> to vector<40xf32>
    %110 = vector.shape_cast %109 : vector<40xf32> to vector<40x1xf32>
    %111 = tpu.iota {dimensions = array<i32: 0>} : vector<40x1xi32>
    %112 = vector.broadcast %0 : i32 to vector<40x1xi32>
    %113 = arith.addi %112, %111 : vector<40x1xi32>
    %c40_i32_19 = arith.constant 40 : i32
    %114 = vector.broadcast %c40_i32_19 : i32 to vector<40x1xi32>
    %115 = arith.cmpi slt, %113, %114 : vector<40x1xi32>
    %116 = arith.addf %97, %110 : vector<40x1xf32>
    %cst_20 = arith.constant 0.000000e+00 : f32
    %117 = vector.broadcast %cst_20 : f32 to vector<40x1xf32>
    %118 = arith.select %115, %116, %117 : vector<40x1xi1>, vector<40x1xf32>
    %119 = vector.shape_cast %118 : vector<40x1xf32> to vector<1x40x1xf32>
    %cst_21 = arith.constant dense<0.000000e+00> : vector<1xf32>
    %120 = vector.multi_reduction <add>, %119, %cst_21 [1, 2] : vector<1x40x1xf32> to vector<1xf32>
    %121 = vector.shape_cast %120 : vector<1xf32> to vector<1x1x1xf32>
    %122 = vector.extract %121[0, 0, 0] : f32 from vector<1x1x1xf32>
    %123 = vector.broadcast %122 : f32 to vector<1x1x1xf32>
    %c0_22 = arith.constant 0 : index
    %c0_23 = arith.constant 0 : index
    %c0_24 = arith.constant 0 : index
    %124 = vector.load %arg6[%c0_22, %c0_23, %c0_24] : memref<1x1x1xf32, #tpu.memory_space<vmem>>, vector<1x1x1xf32>
    tpu.vector_store %arg6[%c0_22, %c0_23, %c0_24], %123 {strides = array<i32>} : memref<1x1x1xf32, #tpu.memory_space<vmem>>, vector<1x1x1xf32>,
    return
  }
  func.func @transform_0(%arg0: i32) -> (i32, i32) {
    %c0_i32 = arith.constant 0 : i32
    %c0_i32_0 = arith.constant 0 : i32
    return %arg0, %c0_i32 : i32, i32
  }
  func.func @transform_1(%arg0: i32) -> (i32, i32) {
    %c0_i32 = arith.constant 0 : i32
    %c0_i32_0 = arith.constant 0 : i32
    return %arg0, %c0_i32 : i32, i32
  }
  func.func @transform_2(%arg0: i32) -> (i32, i32) {
    %c0_i32 = arith.constant 0 : i32
    %c0_i32_0 = arith.constant 0 : i32
    return %arg0, %c0_i32 : i32, i32
  }
  func.func @transform_3(%arg0: i32) -> (i32, i32) {
    %c0_i32 = arith.constant 0 : i32
    %c0_i32_0 = arith.constant 0 : i32
    %c0_i32_1 = arith.constant 0 : i32
    return %c0_i32, %c0_i32_0 : i32, i32
  }
  func.func @transform_4(%arg0: i32) -> (i32, i32) {
    %c0_i32 = arith.constant 0 : i32
    %c0_i32_0 = arith.constant 0 : i32
    %c0_i32_1 = arith.constant 0 : i32
    return %c0_i32, %c0_i32_0 : i32, i32
  }
  func.func @transform_5(%arg0: i32) -> (i32, i32, i32) {
    %c0_i32 = arith.constant 0 : i32
    %c0_i32_0 = arith.constant 0 : i32
    %c0_i32_1 = arith.constant 0 : i32
    return %arg0, %c0_i32, %c0_i32_0 : i32, i32, i32
  }
}

</mosaic_0001>

<llo_original>
// kernel: tpu_custom_call.1
$region0: #{tpu_custom_call.1}
  #allocation0 [shape = 'u32[]', space=smem, size = 0x4, offset = 0x4, fixed_abs, tag = 'smem constant byte address 0x4 - core index']
  #allocation1 [shape = 'u32[72,128]{1,0:T(1,128)}', space=vmem, size = 0x9000, scoped, tag = 'internal scratch']
  %s0 = inlined_call_operand.vmem [shape: s32[40,1], index: 0, kind: input, shape index: {}]
  %s1 = inlined_call_operand.vmem [shape: s32[40,4], index: 1, kind: input, shape index: {}]
  %s2 = inlined_call_operand.vmem [shape: s32[40,8], index: 2, kind: input, shape index: {}]
  %s3 = inlined_call_operand.vmem [shape: f32[100,128], index: 3, kind: input, shape index: {}]
  %s4 = inlined_call_operand.vmem [shape: f32[128,100], index: 4, kind: input, shape index: {}]
  %s5 = inlined_call_operand.hbm [shape: f32[1,1,1], index: 5, kind: output, shape index: {}]
  %s6 = sld [smem:[#allocation0]]
  $region30: #{tpu_custom_call.1} parent=0
    _
  %s8 = ssub.s32 1, %s6
  %s9 = scalar_select 0, %s8, %s6
  $region1: #{tpu_custom_call.1} parent=0
    #allocation2 [shape = 'u8[512]{0}', space=vmem, size = 0x400, scoped, tag = 'output window, operand 0, single buffered']
    #allocation3 [shape = 's32[1]{0}', space=sflag, size = 0x4, scoped, tag = 'scoped memory for tpu_custom_call.1']
    %10 = vsyncpa [#allocation3], 0
    // Predicated region
    $region2: #{tpu_custom_call.1} parent=1 // pred_check
      _
    $region3: #{tpu_custom_call.1} parent=1 // pred_check_branch
      %12 = sbr.rel (0) target = $region5
    $region4: #{tpu_custom_call.1} parent=1 // pred_region
      _
    $region5: #{tpu_custom_call.1} parent=1 // pred_fallthru
      _
    // Predicated region
    $region6: #{tpu_custom_call.1} parent=1 // pred_check
      _
    $region7: #{tpu_custom_call.1} parent=1 // pred_check_branch
      %14 = sbr.rel (0) target = $region9
    $region8: #{tpu_custom_call.1} parent=1 // pred_region
      _
    $region9: #{tpu_custom_call.1} parent=1 // pred_fallthru
      _
    // Predicated region
    $region10: #{tpu_custom_call.1} parent=1 // pred_check
      _
    $region11: #{tpu_custom_call.1} parent=1 // pred_check_branch
      %16 = sbr.rel (0) target = $region13
    $region12: #{tpu_custom_call.1} parent=1 // pred_region
      _
    $region13: #{tpu_custom_call.1} parent=1 // pred_fallthru
      _
    // Predicated region
    $region14: #{tpu_custom_call.1} parent=1 // pred_check
      _
    $region15: #{tpu_custom_call.1} parent=1 // pred_check_branch
      %18 = sbr.rel (0) target = $region17
    $region16: #{tpu_custom_call.1} parent=1 // pred_region
      _
    $region17: #{tpu_custom_call.1} parent=1 // pred_fallthru
      _
    // Predicated region
    $region18: #{tpu_custom_call.1} parent=1 // pred_check
      _
    $region19: #{tpu_custom_call.1} parent=1 // pred_check_branch
      %20 = sbr.rel (0) target = $region21
    $region20: #{tpu_custom_call.1} parent=1 // pred_region
      _
    $region21: #{tpu_custom_call.1} parent=1 // pred_fallthru
      _
    %s21 = smul.u32 0, 40
    %v22 = vld [vmem:[%s3] sm:$0xff]
    %v23 = vld [vmem:[%s3 + $0x8] sm:$0xff]
    %v24 = vld [vmem:[%s3 + $0x10] sm:$0xff]
    %v25 = vld [vmem:[%s3 + $0x18] sm:$0xff]
    %v26 = vld [vmem:[%s3 + $0x20] sm:$0xff]
    %v27 = vld [vmem:[%s3 + $0x28] sm:$0xff]
    %v28 = vld [vmem:[%s3 + $0x30] sm:$0xff]
    %v29 = vld [vmem:[%s3 + $0x38] sm:$0xff]
    %v30 = vld [vmem:[%s3 + $0x40] sm:$0xff]
    %v31 = vld [vmem:[%s3 + $0x48] sm:$0xff]
    %v32 = vld [vmem:[%s3 + $0x50] sm:$0xff]
    %v33 = vld [vmem:[%s3 + $0x58] sm:$0xff]
    %v34 = vld [vmem:[%s3 + $0x60] sm:$0xf]
    %v35 = vld [vmem:[%s4] sm:$0xff]
    %v36 = vld [vmem:[%s4 + $0x8] sm:$0xff]
    %v37 = vld [vmem:[%s4 + $0x10] sm:$0xff]
    %v38 = vld [vmem:[%s4 + $0x18] sm:$0xff]
    %v39 = vld [vmem:[%s4 + $0x20] sm:$0xff]
    %v40 = vld [vmem:[%s4 + $0x28] sm:$0xff]
    %v41 = vld [vmem:[%s4 + $0x30] sm:$0xff]
    %v42 = vld [vmem:[%s4 + $0x38] sm:$0xff]
    %v43 = vld [vmem:[%s4 + $0x40] sm:$0xff]
    %v44 = vld [vmem:[%s4 + $0x48] sm:$0xff]
    %v45 = vld [vmem:[%s4 + $0x50] sm:$0xff]
    %v46 = vld [vmem:[%s4 + $0x58] sm:$0xff]
    %v47 = vld [vmem:[%s4 + $0x60] sm:$0xff]
    %v48 = vld [vmem:[%s4 + $0x68] sm:$0xff]
    %v49 = vld [vmem:[%s4 + $0x70] sm:$0xff]
    %v50 = vld [vmem:[%s4 + $0x78] sm:$0xff]
    %v51 = vlaneseq
    %v52 = vand.u32 %v51, 127
    %v53 = vld [vmem:[%s0] sm:$0xff]
    %v54 = vld [vmem:[%s0 + $0x8] sm:$0xff]
    %v55 = vld [vmem:[%s0 + $0x10] sm:$0xff]
    %v56 = vld [vmem:[%s0 + $0x18] sm:$0xff]
    %v57 = vld [vmem:[%s0 + $0x20] sm:$0xff]
    %58 = vset.pattern.permute.xlu0 0
    %59 = vperm.xlu0 %58, %v53
    %v60 = vpop.permute.xlu0 %59
    %61 = vset.pattern.permute.xlu0 0
    %62 = vperm.xlu0 %61, %v54
    %v63 = vpop.permute.xlu0 %62
    %64 = vset.pattern.permute.xlu0 0
    %65 = vperm.xlu0 %64, %v55
    %v66 = vpop.permute.xlu0 %65
    %67 = vset.pattern.permute.xlu0 0
    %68 = vperm.xlu0 %67, %v56
    %v69 = vpop.permute.xlu0 %68
    %70 = vset.pattern.permute.xlu0 0
    %71 = vperm.xlu0 %70, %v57
    %v72 = vpop.permute.xlu0 %71
    %vm73 = vcmp.eq.s32.totalorder %v52, %v60
    %vm74 = vcmp.eq.s32.totalorder %v52, %v63
    %vm75 = vcmp.eq.s32.totalorder %v52, %v66
    %vm76 = vcmp.eq.s32.totalorder %v52, %v69
    %vm77 = vcmp.eq.s32.totalorder %v52, %v72
    %v78 = vsel %vm73, 1, 0
    %v79 = vsel %vm74, 1, 0
    %v80 = vsel %vm75, 1, 0
    %v81 = vsel %vm76, 1, 0
    %v82 = vsel %vm77, 1, 0
    %v83 = vcvt.s32.f32 %v78
    %v84 = vcvt.s32.f32 %v79
    %v85 = vcvt.s32.f32 %v80
    %v86 = vcvt.s32.f32 %v81
    %v87 = vcvt.s32.f32 %v82
    %vm88 = vcmask 818176
    %v90 = vsel %vm88, %v83, 0
    %v93 = vsel %vm88, %v84, 0
    %v96 = vsel %vm88, %v85, 0
    %v99 = vsel %vm88, %v86, 0
    %v102 = vsel %vm88, %v87, 0
    %vm104 = vcmask 1043456
    %v106 = vsel %vm104, %v34, 0
    %108 = vmatpush.msra.mxu0 0.0
    %109 = vmatpush.msra.mxu0 0.0
    %110 = vmatpush.msra.mxu0 0.0
    %111 = vmatpush.msra.mxu0 %v106
    %112 = vmatpush.msra.mxu0 %v33
    %113 = vmatpush.msra.mxu0 %v32
    %114 = vmatpush.msra.mxu0 %v31
    %115 = vmatpush.msra.mxu0 %v30
    %116 = vmatpush.msra.mxu0 %v29
    %117 = vmatpush.msra.mxu0 %v28
    %118 = vmatpush.msra.mxu0 %v27
    %119 = vmatpush.msra.mxu0 %v26
    %120 = vmatpush.msra.mxu0 %v25
    %121 = vmatpush.msra.mxu0 %v24
    %122 = vmatpush.msra.mxu0 %v23
    %123 = vmatpush.msra.mxu0 %v22
    %124 = vmatmul.f32.gmra.mxu0 %v90
    %v125 = vpop.f32.mrf.mxu0
    %v126 = vadd.f32 0.0, %v125
    %127 = vmatmul.f32.gmra.mxu0 %v93
    %v128 = vpop.f32.mrf.mxu0
    %v129 = vadd.f32 0.0, %v128
    %130 = vmatmul.f32.gmra.mxu0 %v96
    %v131 = vpop.f32.mrf.mxu0
    %v132 = vadd.f32 0.0, %v131
    %133 = vmatmul.f32.gmra.mxu0 %v99
    %v134 = vpop.f32.mrf.mxu0
    %v135 = vadd.f32 0.0, %v134
    %136 = vmatmul.f32.gmra.mxu0 %v102
    %v137 = vpop.f32.mrf.mxu0
    %v138 = vadd.f32 0.0, %v137
    %139 = vdwg.mxu0
    %140 = vmatpush.msra.mxu0 %v50
    %141 = vmatpush.msra.mxu0 %v49
    %142 = vmatpush.msra.mxu0 %v48
    %143 = vmatpush.msra.mxu0 %v47
    %144 = vmatpush.msra.mxu0 %v46
    %145 = vmatpush.msra.mxu0 %v45
    %146 = vmatpush.msra.mxu0 %v44
    %147 = vmatpush.msra.mxu0 %v43
    %148 = vmatpush.msra.mxu0 %v42
    %149 = vmatpush.msra.mxu0 %v41
    %150 = vmatpush.msra.mxu0 %v40
    %151 = vmatpush.msra.mxu0 %v39
    %152 = vmatpush.msra.mxu0 %v38
    %153 = vmatpush.msra.mxu0 %v37
    %154 = vmatpush.msra.mxu0 %v36
    %155 = vmatpush.msra.mxu0 %v35
    %156 = vmatmul.f32.gmra.mxu0 %v126
    %v157 = vpop.f32.mrf.mxu0
    %v158 = vadd.f32 0.0, %v157
    %159 = vmatmul.f32.gmra.mxu0 %v129
    %v160 = vpop.f32.mrf.mxu0
    %v161 = vadd.f32 0.0, %v160
    %162 = vmatmul.f32.gmra.mxu0 %v132
    %v163 = vpop.f32.mrf.mxu0
    %v164 = vadd.f32 0.0, %v163
    %165 = vmatmul.f32.gmra.mxu0 %v135
    %v166 = vpop.f32.mrf.mxu0
    %v167 = vadd.f32 0.0, %v166
    %168 = vmatmul.f32.gmra.mxu0 %v138
    %v169 = vpop.f32.mrf.mxu0
    %v170 = vadd.f32 0.0, %v169
    %171 = vdwg.mxu0
    %v172 = vld [vmem:[%s1] sm:$0xff]
    %v173 = vld [vmem:[%s1 + $0x8] sm:$0xff]
    %v174 = vld [vmem:[%s1 + $0x10] sm:$0xff]
    %v175 = vld [vmem:[%s1 + $0x18] sm:$0xff]
    %v176 = vld [vmem:[%s1 + $0x20] sm:$0xff]
    %v177 = vld [vmem:[%s2] sm:$0xff]
    %v178 = vld [vmem:[%s2 + $0x8] sm:$0xff]
    %v179 = vld [vmem:[%s2 + $0x10] sm:$0xff]
    %v180 = vld [vmem:[%s2 + $0x18] sm:$0xff]
    %v181 = vld [vmem:[%s2 + $0x20] sm:$0xff]
    %182 = vset.pattern.permute.xlu0 0
    %183 = vperm.xlu0 %182, %v172
    %v184 = vpop.permute.xlu0 %183
    %185 = vset.pattern.permute.xlu0 0
    %186 = vperm.xlu0 %185, %v173
    %v187 = vpop.permute.xlu0 %186
    %188 = vset.pattern.permute.xlu0 0
    %189 = vperm.xlu0 %188, %v174
    %v190 = vpop.permute.xlu0 %189
    %191 = vset.pattern.permute.xlu0 0
    %192 = vperm.xlu0 %191, %v175
    %v193 = vpop.permute.xlu0 %192
    %194 = vset.pattern.permute.xlu0 0
    %195 = vperm.xlu0 %194, %v176
    %v196 = vpop.permute.xlu0 %195
    %vm197 = vcmp.eq.s32.totalorder %v52, %v184
    %vm198 = vcmp.eq.s32.totalorder %v52, %v187
    %vm199 = vcmp.eq.s32.totalorder %v52, %v190
    %vm200 = vcmp.eq.s32.totalorder %v52, %v193
    %vm201 = vcmp.eq.s32.totalorder %v52, %v196
    %v202 = vsel %vm197, 1, 0
    %v203 = vsel %vm198, 1, 0
    %v204 = vsel %vm199, 1, 0
    %v205 = vsel %vm200, 1, 0
    %v206 = vsel %vm201, 1, 0
    %v207 = vcvt.s32.f32 %v202
    %v208 = vcvt.s32.f32 %v203
    %v209 = vcvt.s32.f32 %v204
    %v210 = vcvt.s32.f32 %v205
    %v211 = vcvt.s32.f32 %v206
    %v212 = vadd.f32 %v207, 0.0
    %v213 = vadd.f32 %v208, 0.0
    %v214 = vadd.f32 %v209, 0.0
    %v215 = vadd.f32 %v210, 0.0
    %v216 = vadd.f32 %v211, 0.0
    %217 = vset.pattern.permute.xlu0 1
    %218 = vperm.xlu0 %217, %v172
    %v219 = vpop.permute.xlu0 %218
    %220 = vset.pattern.permute.xlu0 1
    %221 = vperm.xlu0 %220, %v173
    %v222 = vpop.permute.xlu0 %221
    %223 = vset.pattern.permute.xlu0 1
    %224 = vperm.xlu0 %223, %v174
    %v225 = vpop.permute.xlu0 %224
    %226 = vset.pattern.permute.xlu0 1
    %227 = vperm.xlu0 %226, %v175
    %v228 = vpop.permute.xlu0 %227
    %229 = vset.pattern.permute.xlu0 1
    %230 = vperm.xlu0 %229, %v176
    %v231 = vpop.permute.xlu0 %230
    %vm232 = vcmp.eq.s32.totalorder %v52, %v219
    %vm233 = vcmp.eq.s32.totalorder %v52, %v222
    %vm234 = vcmp.eq.s32.totalorder %v52, %v225
    %vm235 = vcmp.eq.s32.totalorder %v52, %v228
    %vm236 = vcmp.eq.s32.totalorder %v52, %v231
    %v237 = vsel %vm232, 1, 0
    %v238 = vsel %vm233, 1, 0
    %v239 = vsel %vm234, 1, 0
    %v240 = vsel %vm235, 1, 0
    %v241 = vsel %vm236, 1, 0
    %v242 = vcvt.s32.f32 %v237
    %v243 = vcvt.s32.f32 %v238
    %v244 = vcvt.s32.f32 %v239
    %v245 = vcvt.s32.f32 %v240
    %v246 = vcvt.s32.f32 %v241
    %v247 = vadd.f32 %v212, %v242
    %v248 = vadd.f32 %v213, %v243
    %v249 = vadd.f32 %v214, %v244
    %v250 = vadd.f32 %v215, %v245
    %v251 = vadd.f32 %v216, %v246
    %252 = vset.pattern.permute.xlu0 2
    %253 = vperm.xlu0 %252, %v172
    %v254 = vpop.permute.xlu0 %253
    %255 = vset.pattern.permute.xlu0 2
    %256 = vperm.xlu0 %255, %v173
    %v257 = vpop.permute.xlu0 %256
    %258 = vset.pattern.permute.xlu0 2
    %259 = vperm.xlu0 %258, %v174
    %v260 = vpop.permute.xlu0 %259
    %261 = vset.pattern.permute.xlu0 2
    %262 = vperm.xlu0 %261, %v175
    %v263 = vpop.permute.xlu0 %262
    %264 = vset.pattern.permute.xlu0 2
    %265 = vperm.xlu0 %264, %v176
    %v266 = vpop.permute.xlu0 %265
    %vm267 = vcmp.eq.s32.totalorder %v52, %v254
    %vm268 = vcmp.eq.s32.totalorder %v52, %v257
    %vm269 = vcmp.eq.s32.totalorder %v52, %v260
    %vm270 = vcmp.eq.s32.totalorder %v52, %v263
    %vm271 = vcmp.eq.s32.totalorder %v52, %v266
    %v272 = vsel %vm267, 1, 0
    %v273 = vsel %vm268, 1, 0
    %v274 = vsel %vm269, 1, 0
    %v275 = vsel %vm270, 1, 0
    %v276 = vsel %vm271, 1, 0
    %v277 = vcvt.s32.f32 %v272
    %v278 = vcvt.s32.f32 %v273
    %v279 = vcvt.s32.f32 %v274
    %v280 = vcvt.s32.f32 %v275
    %v281 = vcvt.s32.f32 %v276
    %v282 = vadd.f32 %v247, %v277
    %v283 = vadd.f32 %v248, %v278
    %v284 = vadd.f32 %v249, %v279
    %v285 = vadd.f32 %v250, %v280
    %v286 = vadd.f32 %v251, %v281
    %287 = vset.pattern.permute.xlu0 3
    %288 = vperm.xlu0 %287, %v172
    %v289 = vpop.permute.xlu0 %288
    %290 = vset.pattern.permute.xlu0 3
    %291 = vperm.xlu0 %290, %v173
    %v292 = vpop.permute.xlu0 %291
    %293 = vset.pattern.permute.xlu0 3
    %294 = vperm.xlu0 %293, %v174
    %v295 = vpop.permute.xlu0 %294
    %296 = vset.pattern.permute.xlu0 3
    %297 = vperm.xlu0 %296, %v175
    %v298 = vpop.permute.xlu0 %297
    %299 = vset.pattern.permute.xlu0 3
    %300 = vperm.xlu0 %299, %v176
    %v301 = vpop.permute.xlu0 %300
    %vm302 = vcmp.eq.s32.totalorder %v52, %v289
    %vm303 = vcmp.eq.s32.totalorder %v52, %v292
    %vm304 = vcmp.eq.s32.totalorder %v52, %v295
    %vm305 = vcmp.eq.s32.totalorder %v52, %v298
    %vm306 = vcmp.eq.s32.totalorder %v52, %v301
    %v307 = vsel %vm302, 1, 0
    %v308 = vsel %vm303, 1, 0
    %v309 = vsel %vm304, 1, 0
    %v310 = vsel %vm305, 1, 0
    %v311 = vsel %vm306, 1, 0
    %v312 = vcvt.s32.f32 %v307
    %v313 = vcvt.s32.f32 %v308
    %v314 = vcvt.s32.f32 %v309
    %v315 = vcvt.s32.f32 %v310
    %v316 = vcvt.s32.f32 %v311
    %v317 = vadd.f32 %v282, %v312
    %v318 = vadd.f32 %v283, %v313
    %v319 = vadd.f32 %v284, %v314
    %v320 = vadd.f32 %v285, %v315
    %v321 = vadd.f32 %v286, %v316
    %322 = vset.pattern.permute.xlu0 0
    %323 = vperm.xlu0 %322, %v177
    %v324 = vpop.permute.xlu0 %323
    %325 = vset.pattern.permute.xlu0 0
    %326 = vperm.xlu0 %325, %v178
    %v327 = vpop.permute.xlu0 %326
    %328 = vset.pattern.permute.xlu0 0
    %329 = vperm.xlu0 %328, %v179
    %v330 = vpop.permute.xlu0 %329
    %331 = vset.pattern.permute.xlu0 0
    %332 = vperm.xlu0 %331, %v180
    %v333 = vpop.permute.xlu0 %332
    %334 = vset.pattern.permute.xlu0 0
    %335 = vperm.xlu0 %334, %v181
    %v336 = vpop.permute.xlu0 %335
    %vm337 = vcmp.eq.s32.totalorder %v52, %v324
    %vm338 = vcmp.eq.s32.totalorder %v52, %v327
    %vm339 = vcmp.eq.s32.totalorder %v52, %v330
    %vm340 = vcmp.eq.s32.totalorder %v52, %v333
    %vm341 = vcmp.eq.s32.totalorder %v52, %v336
    %v342 = vsel %vm337, 1, 0
    %v343 = vsel %vm338, 1, 0
    %v344 = vsel %vm339, 1, 0
    %v345 = vsel %vm340, 1, 0
    %v346 = vsel %vm341, 1, 0
    %v347 = vcvt.s32.f32 %v342
    %v348 = vcvt.s32.f32 %v343
    %v349 = vcvt.s32.f32 %v344
    %v350 = vcvt.s32.f32 %v345
    %v351 = vcvt.s32.f32 %v346
    %v352 = vadd.f32 %v347, 0.0
    %v353 = vadd.f32 %v348, 0.0
    %v354 = vadd.f32 %v349, 0.0
    %v355 = vadd.f32 %v350, 0.0
    %v356 = vadd.f32 %v351, 0.0
    %357 = vset.pattern.permute.xlu0 1
    %358 = vperm.xlu0 %357, %v177
    %v359 = vpop.permute.xlu0 %358
    %360 = vset.pattern.permute.xlu0 1
    %361 = vperm.xlu0 %360, %v178
    %v362 = vpop.permute.xlu0 %361
    %363 = vset.pattern.permute.xlu0 1
    %364 = vperm.xlu0 %363, %v179
    %v365 = vpop.permute.xlu0 %364
    %366 = vset.pattern.permute.xlu0 1
    %367 = vperm.xlu0 %366, %v180
    %v368 = vpop.permute.xlu0 %367
    %369 = vset.pattern.permute.xlu0 1
    %370 = vperm.xlu0 %369, %v181
    %v371 = vpop.permute.xlu0 %370
    %vm372 = vcmp.eq.s32.totalorder %v52, %v359
    %vm373 = vcmp.eq.s32.totalorder %v52, %v362
    %vm374 = vcmp.eq.s32.totalorder %v52, %v365
    %vm375 = vcmp.eq.s32.totalorder %v52, %v368
    %vm376 = vcmp.eq.s32.totalorder %v52, %v371
    %v377 = vsel %vm372, 1, 0
    %v378 = vsel %vm373, 1, 0
    %v379 = vsel %vm374, 1, 0
    %v380 = vsel %vm375, 1, 0
    %v381 = vsel %vm376, 1, 0
    %v382 = vcvt.s32.f32 %v377
    %v383 = vcvt.s32.f32 %v378
    %v384 = vcvt.s32.f32 %v379
    %v385 = vcvt.s32.f32 %v380
    %v386 = vcvt.s32.f32 %v381
    %v387 = vadd.f32 %v352, %v382
    %v388 = vadd.f32 %v353, %v383
    %v389 = vadd.f32 %v354, %v384
    %v390 = vadd.f32 %v355, %v385
    %v391 = vadd.f32 %v356, %v386
    %392 = vset.pattern.permute.xlu0 2
    %393 = vperm.xlu0 %392, %v177
    %v394 = vpop.permute.xlu0 %393
    %395 = vset.pattern.permute.xlu0 2
    %396 = vperm.xlu0 %395, %v178
    %v397 = vpop.permute.xlu0 %396
    %398 = vset.pattern.permute.xlu0 2
    %399 = vperm.xlu0 %398, %v179
    %v400 = vpop.permute.xlu0 %399
    %401 = vset.pattern.permute.xlu0 2
    %402 = vperm.xlu0 %401, %v180
    %v403 = vpop.permute.xlu0 %402
    %404 = vset.pattern.permute.xlu0 2
    %405 = vperm.xlu0 %404, %v181
    %v406 = vpop.permute.xlu0 %405
    %vm407 = vcmp.eq.s32.totalorder %v52, %v394
    %vm408 = vcmp.eq.s32.totalorder %v52, %v397
    %vm409 = vcmp.eq.s32.totalorder %v52, %v400
    %vm410 = vcmp.eq.s32.totalorder %v52, %v403
    %vm411 = vcmp.eq.s32.totalorder %v52, %v406
    %v412 = vsel %vm407, 1, 0
    %v413 = vsel %vm408, 1, 0
    %v414 = vsel %vm409, 1, 0
    %v415 = vsel %vm410, 1, 0
    %v416 = vsel %vm411, 1, 0
    %v417 = vcvt.s32.f32 %v412
    %v418 = vcvt.s32.f32 %v413
    %v419 = vcvt.s32.f32 %v414
    %v420 = vcvt.s32.f32 %v415
    %v421 = vcvt.s32.f32 %v416
    %v422 = vadd.f32 %v387, %v417
    %v423 = vadd.f32 %v388, %v418
    %v424 = vadd.f32 %v389, %v419
    %v425 = vadd.f32 %v390, %v420
    %v426 = vadd.f32 %v391, %v421
    %427 = vset.pattern.permute.xlu0 3
    %428 = vperm.xlu0 %427, %v177
    %v429 = vpop.permute.xlu0 %428
    %430 = vset.pattern.permute.xlu0 3
    %431 = vperm.xlu0 %430, %v178
    %v432 = vpop.permute.xlu0 %431
    %433 = vset.pattern.permute.xlu0 3
    %434 = vperm.xlu0 %433, %v179
    %v435 = vpop.permute.xlu0 %434
    %436 = vset.pattern.permute.xlu0 3
    %437 = vperm.xlu0 %436, %v180
    %v438 = vpop.permute.xlu0 %437
    %439 = vset.pattern.permute.xlu0 3
    %440 = vperm.xlu0 %439, %v181
    %v441 = vpop.permute.xlu0 %440
    %vm442 = vcmp.eq.s32.totalorder %v52, %v429
    %vm443 = vcmp.eq.s32.totalorder %v52, %v432
    %vm444 = vcmp.eq.s32.totalorder %v52, %v435
    %vm445 = vcmp.eq.s32.totalorder %v52, %v438
    %vm446 = vcmp.eq.s32.totalorder %v52, %v441
    %v447 = vsel %vm442, 1, 0
    %v448 = vsel %vm443, 1, 0
    %v449 = vsel %vm444, 1, 0
    %v450 = vsel %vm445, 1, 0
    %v451 = vsel %vm446, 1, 0
    %v452 = vcvt.s32.f32 %v447
    %v453 = vcvt.s32.f32 %v448
    %v454 = vcvt.s32.f32 %v449
    %v455 = vcvt.s32.f32 %v450
    %v456 = vcvt.s32.f32 %v451
    %v457 = vadd.f32 %v422, %v452
    %v458 = vadd.f32 %v423, %v453
    %v459 = vadd.f32 %v424, %v454
    %v460 = vadd.f32 %v425, %v455
    %v461 = vadd.f32 %v426, %v456
    %462 = vset.pattern.permute.xlu0 4
    %463 = vperm.xlu0 %462, %v177
    %v464 = vpop.permute.xlu0 %463
    %465 = vset.pattern.permute.xlu0 4
    %466 = vperm.xlu0 %465, %v178
    %v467 = vpop.permute.xlu0 %466
    %468 = vset.pattern.permute.xlu0 4
    %469 = vperm.xlu0 %468, %v179
    %v470 = vpop.permute.xlu0 %469
    %471 = vset.pattern.permute.xlu0 4
    %472 = vperm.xlu0 %471, %v180
    %v473 = vpop.permute.xlu0 %472
    %474 = vset.pattern.permute.xlu0 4
    %475 = vperm.xlu0 %474, %v181
    %v476 = vpop.permute.xlu0 %475
    %vm477 = vcmp.eq.s32.totalorder %v52, %v464
    %vm478 = vcmp.eq.s32.totalorder %v52, %v467
    %vm479 = vcmp.eq.s32.totalorder %v52, %v470
    %vm480 = vcmp.eq.s32.totalorder %v52, %v473
    %vm481 = vcmp.eq.s32.totalorder %v52, %v476
    %v482 = vsel %vm477, 1, 0
    %v483 = vsel %vm478, 1, 0
    %v484 = vsel %vm479, 1, 0
    %v485 = vsel %vm480, 1, 0
    %v486 = vsel %vm481, 1, 0
    %v487 = vcvt.s32.f32 %v482
    %v488 = vcvt.s32.f32 %v483
    %v489 = vcvt.s32.f32 %v484
    %v490 = vcvt.s32.f32 %v485
    %v491 = vcvt.s32.f32 %v486
    %v492 = vadd.f32 %v457, %v487
    %v493 = vadd.f32 %v458, %v488
    %v494 = vadd.f32 %v459, %v489
    %v495 = vadd.f32 %v460, %v490
    %v496 = vadd.f32 %v461, %v491
    %497 = vset.pattern.permute.xlu0 5
    %498 = vperm.xlu0 %497, %v177
    %v499 = vpop.permute.xlu0 %498
    %500 = vset.pattern.permute.xlu0 5
    %501 = vperm.xlu0 %500, %v178
    %v502 = vpop.permute.xlu0 %501
    %503 = vset.pattern.permute.xlu0 5
    %504 = vperm.xlu0 %503, %v179
    %v505 = vpop.permute.xlu0 %504
    %506 = vset.pattern.permute.xlu0 5
    %507 = vperm.xlu0 %506, %v180
    %v508 = vpop.permute.xlu0 %507
    %509 = vset.pattern.permute.xlu0 5
    %510 = vperm.xlu0 %509, %v181
    %v511 = vpop.permute.xlu0 %510
    %vm512 = vcmp.eq.s32.totalorder %v52, %v499
    %vm513 = vcmp.eq.s32.totalorder %v52, %v502
    %vm514 = vcmp.eq.s32.totalorder %v52, %v505
    %vm515 = vcmp.eq.s32.totalorder %v52, %v508
    %vm516 = vcmp.eq.s32.totalorder %v52, %v511
    %v517 = vsel %vm512, 1, 0
    %v518 = vsel %vm513, 1, 0
    %v519 = vsel %vm514, 1, 0
    %v520 = vsel %vm515, 1, 0
    %v521 = vsel %vm516, 1, 0
    %v522 = vcvt.s32.f32 %v517
    %v523 = vcvt.s32.f32 %v518
    %v524 = vcvt.s32.f32 %v519
    %v525 = vcvt.s32.f32 %v520
    %v526 = vcvt.s32.f32 %v521
    %v527 = vadd.f32 %v492, %v522
    %v528 = vadd.f32 %v493, %v523
    %v529 = vadd.f32 %v494, %v524
    %v530 = vadd.f32 %v495, %v525
    %v531 = vadd.f32 %v496, %v526
    %532 = vset.pattern.permute.xlu0 6
    %533 = vperm.xlu0 %532, %v177
    %v534 = vpop.permute.xlu0 %533
    %535 = vset.pattern.permute.xlu0 6
    %536 = vperm.xlu0 %535, %v178
    %v537 = vpop.permute.xlu0 %536
    %538 = vset.pattern.permute.xlu0 6
    %539 = vperm.xlu0 %538, %v179
    %v540 = vpop.permute.xlu0 %539
    %541 = vset.pattern.permute.xlu0 6
    %542 = vperm.xlu0 %541, %v180
    %v543 = vpop.permute.xlu0 %542
    %544 = vset.pattern.permute.xlu0 6
    %545 = vperm.xlu0 %544, %v181
    %v546 = vpop.permute.xlu0 %545
    %vm547 = vcmp.eq.s32.totalorder %v52, %v534
    %vm548 = vcmp.eq.s32.totalorder %v52, %v537
    %vm549 = vcmp.eq.s32.totalorder %v52, %v540
    %vm550 = vcmp.eq.s32.totalorder %v52, %v543
    %vm551 = vcmp.eq.s32.totalorder %v52, %v546
    %v552 = vsel %vm547, 1, 0
    %v553 = vsel %vm548, 1, 0
    %v554 = vsel %vm549, 1, 0
    %v555 = vsel %vm550, 1, 0
    %v556 = vsel %vm551, 1, 0
    %v557 = vcvt.s32.f32 %v552
    %v558 = vcvt.s32.f32 %v553
    %v559 = vcvt.s32.f32 %v554
    %v560 = vcvt.s32.f32 %v555
    %v561 = vcvt.s32.f32 %v556
    %v562 = vadd.f32 %v527, %v557
    %v563 = vadd.f32 %v528, %v558
    %v564 = vadd.f32 %v529, %v559
    %v565 = vadd.f32 %v530, %v560
    %v566 = vadd.f32 %v531, %v561
    %567 = vset.pattern.permute.xlu0 7
    %568 = vperm.xlu0 %567, %v177
    %v569 = vpop.permute.xlu0 %568
    %570 = vset.pattern.permute.xlu0 7
    %571 = vperm.xlu0 %570, %v178
    %v572 = vpop.permute.xlu0 %571
    %573 = vset.pattern.permute.xlu0 7
    %574 = vperm.xlu0 %573, %v179
    %v575 = vpop.permute.xlu0 %574
    %576 = vset.pattern.permute.xlu0 7
    %577 = vperm.xlu0 %576, %v180
    %v578 = vpop.permute.xlu0 %577
    %579 = vset.pattern.permute.xlu0 7
    %580 = vperm.xlu0 %579, %v181
    %v581 = vpop.permute.xlu0 %580
    %vm582 = vcmp.eq.s32.totalorder %v52, %v569
    %vm583 = vcmp.eq.s32.totalorder %v52, %v572
    %vm584 = vcmp.eq.s32.totalorder %v52, %v575
    %vm585 = vcmp.eq.s32.totalorder %v52, %v578
    %vm586 = vcmp.eq.s32.totalorder %v52, %v581
    %v587 = vsel %vm582, 1, 0
    %v588 = vsel %vm583, 1, 0
    %v589 = vsel %vm584, 1, 0
    %v590 = vsel %vm585, 1, 0
    %v591 = vsel %vm586, 1, 0
    %v592 = vcvt.s32.f32 %v587
    %v593 = vcvt.s32.f32 %v588
    %v594 = vcvt.s32.f32 %v589
    %v595 = vcvt.s32.f32 %v590
    %v596 = vcvt.s32.f32 %v591
    %v597 = vadd.f32 %v562, %v592
    %v598 = vadd.f32 %v563, %v593
    %v599 = vadd.f32 %v564, %v594
    %v600 = vadd.f32 %v565, %v595
    %v601 = vadd.f32 %v566, %v596
    %v602 = vmul.f32 %v317, %v158
    %v603 = vmul.f32 %v318, %v161
    %v604 = vmul.f32 %v319, %v164
    %v605 = vmul.f32 %v320, %v167
    %v606 = vmul.f32 %v321, %v170
    %v607 = vsel %vm88, %v602, 0.0
    %608 = vadd.xlane.f32.xlu0 %v607
    %v609 = vpop.xlane.xlu0 %608
    %v610 = vsel %vm88, %v603, 0.0
    %611 = vadd.xlane.f32.xlu0 %v610
    %v612 = vpop.xlane.xlu0 %611
    %v613 = vsel %vm88, %v604, 0.0
    %614 = vadd.xlane.f32.xlu0 %v613
    %v615 = vpop.xlane.xlu0 %614
    %v616 = vsel %vm88, %v605, 0.0
    %617 = vadd.xlane.f32.xlu0 %v616
    %v618 = vpop.xlane.xlu0 %617
    %v619 = vsel %vm88, %v606, 0.0
    %620 = vadd.xlane.f32.xlu0 %v619
    %v621 = vpop.xlane.xlu0 %620
    %v622 = vmin.f32 %v609, 0.0
    %v623 = vmin.f32 %v612, 0.0
    %v624 = vmin.f32 %v615, 0.0
    %v625 = vmin.f32 %v618, 0.0
    %v626 = vmin.f32 %v621, 0.0
    %v627 = vand.u32 2147483647, %v609
    %v628 = vand.u32 2147483647, %v612
    %v629 = vand.u32 2147483647, %v615
    %v630 = vand.u32 2147483647, %v618
    %v631 = vand.u32 2147483647, %v621
    %v632 = vsub.f32 0.0, %v627
    %v633 = vsub.f32 0.0, %v628
    %v634 = vsub.f32 0.0, %v629
    %v635 = vsub.f32 0.0, %v630
    %v636 = vsub.f32 0.0, %v631
    %v637 = vmul.f32 %v632, 1.442695
    %v638 = vpow.pop %v637
    %v639 = vmul.f32 %v633, 1.442695
    %v640 = vpow.pop %v639
    %v641 = vmul.f32 %v634, 1.442695
    %v642 = vpow.pop %v641
    %v643 = vmul.f32 %v635, 1.442695
    %v644 = vpow.pop %v643
    %v645 = vmul.f32 %v636, 1.442695
    %v646 = vpow.pop %v645
    %v647 = vadd.f32 %v638, 1.0
    %v648 = vlog2.pop %v647
    %v649 = vmul.f32 %v648, 0.6931472
    %v650 = vmul.f32 -0.5, %v638
    %v651 = vadd.f32 %v650, 1.0
    %v652 = vmul.f32 %v651, %v638
    %v653 = vand.u32 2147483647, %v638
    %vm654 = vcmp.lt.f32.partialorder %v653, 0.0004427343
    %v655 = vsel %vm654, %v652, %v649
    %v656 = vadd.f32 %v640, 1.0
    %v657 = vlog2.pop %v656
    %v658 = vmul.f32 %v657, 0.6931472
    %v659 = vmul.f32 -0.5, %v640
    %v660 = vadd.f32 %v659, 1.0
    %v661 = vmul.f32 %v660, %v640
    %v662 = vand.u32 2147483647, %v640
    %vm663 = vcmp.lt.f32.partialorder %v662, 0.0004427343
    %v664 = vsel %vm663, %v661, %v658
    %v665 = vadd.f32 %v642, 1.0
    %v666 = vlog2.pop %v665
    %v667 = vmul.f32 %v666, 0.6931472
    %v668 = vmul.f32 -0.5, %v642
    %v669 = vadd.f32 %v668, 1.0
    %v670 = vmul.f32 %v669, %v642
    %v671 = vand.u32 2147483647, %v642
    %vm672 = vcmp.lt.f32.partialorder %v671, 0.0004427343
    %v673 = vsel %vm672, %v670, %v667
    %v674 = vadd.f32 %v644, 1.0
    %v675 = vlog2.pop %v674
    %v676 = vmul.f32 %v675, 0.6931472
    %v677 = vmul.f32 -0.5, %v644
    %v678 = vadd.f32 %v677, 1.0
    %v679 = vmul.f32 %v678, %v644
    %v680 = vand.u32 2147483647, %v644
    %vm681 = vcmp.lt.f32.partialorder %v680, 0.0004427343
    %v682 = vsel %vm681, %v679, %v676
    %v683 = vadd.f32 %v646, 1.0
    %v684 = vlog2.pop %v683
    %v685 = vmul.f32 %v684, 0.6931472
    %v686 = vmul.f32 -0.5, %v646
    %v687 = vadd.f32 %v686, 1.0
    %v688 = vmul.f32 %v687, %v646
    %v689 = vand.u32 2147483647, %v646
    %vm690 = vcmp.lt.f32.partialorder %v689, 0.0004427343
    %v691 = vsel %vm690, %v688, %v685
    %v692 = vsub.f32 %v622, %v655
    %v693 = vsub.f32 %v623, %v664
    %v694 = vsub.f32 %v624, %v673
    %v695 = vsub.f32 %v625, %v682
    %v696 = vsub.f32 %v626, %v691
    %v697 = vsub.f32 0.0, %v158
    %v698 = vsub.f32 0.0, %v161
    %v699 = vsub.f32 0.0, %v164
    %v700 = vsub.f32 0.0, %v167
    %v701 = vsub.f32 0.0, %v170
    %v702 = vmin.f32 %v697, 0.0
    %v703 = vmin.f32 %v698, 0.0
    %v704 = vmin.f32 %v699, 0.0
    %v705 = vmin.f32 %v700, 0.0
    %v706 = vmin.f32 %v701, 0.0
    %v707 = vand.u32 2147483647, %v697
    %v708 = vand.u32 2147483647, %v698
    %v709 = vand.u32 2147483647, %v699
    %v710 = vand.u32 2147483647, %v700
    %v711 = vand.u32 2147483647, %v701
    %v712 = vsub.f32 0.0, %v707
    %v713 = vsub.f32 0.0, %v708
    %v714 = vsub.f32 0.0, %v709
    %v715 = vsub.f32 0.0, %v710
    %v716 = vsub.f32 0.0, %v711
    %v717 = vmul.f32 %v712, 1.442695
    %v718 = vpow.pop %v717
    %v719 = vmul.f32 %v713, 1.442695
    %v720 = vpow.pop %v719
    %v721 = vmul.f32 %v714, 1.442695
    %v722 = vpow.pop %v721
    %v723 = vmul.f32 %v715, 1.442695
    %v724 = vpow.pop %v723
    %v725 = vmul.f32 %v716, 1.442695
    %v726 = vpow.pop %v725
    %v727 = vadd.f32 %v718, 1.0
    %v728 = vlog2.pop %v727
    %v729 = vmul.f32 %v728, 0.6931472
    %v730 = vmul.f32 -0.5, %v718
    %v731 = vadd.f32 %v730, 1.0
    %v732 = vmul.f32 %v731, %v718
    %v733 = vand.u32 2147483647, %v718
    %vm734 = vcmp.lt.f32.partialorder %v733, 0.0004427343
    %v735 = vsel %vm734, %v732, %v729
    %v736 = vadd.f32 %v720, 1.0
    %v737 = vlog2.pop %v736
    %v738 = vmul.f32 %v737, 0.6931472
    %v739 = vmul.f32 -0.5, %v720
    %v740 = vadd.f32 %v739, 1.0
    %v741 = vmul.f32 %v740, %v720
    %v742 = vand.u32 2147483647, %v720
    %vm743 = vcmp.lt.f32.partialorder %v742, 0.0004427343
    %v744 = vsel %vm743, %v741, %v738
    %v745 = vadd.f32 %v722, 1.0
    %v746 = vlog2.pop %v745
    %v747 = vmul.f32 %v746, 0.6931472
    %v748 = vmul.f32 -0.5, %v722
    %v749 = vadd.f32 %v748, 1.0
    %v750 = vmul.f32 %v749, %v722
    %v751 = vand.u32 2147483647, %v722
    %vm752 = vcmp.lt.f32.partialorder %v751, 0.0004427343
    %v753 = vsel %vm752, %v750, %v747
    %v754 = vadd.f32 %v724, 1.0
    %v755 = vlog2.pop %v754
    %v756 = vmul.f32 %v755, 0.6931472
    %v757 = vmul.f32 -0.5, %v724
    %v758 = vadd.f32 %v757, 1.0
    %v759 = vmul.f32 %v758, %v724
    %v760 = vand.u32 2147483647, %v724
    %vm761 = vcmp.lt.f32.partialorder %v760, 0.0004427343
    %v762 = vsel %vm761, %v759, %v756
    %v763 = vadd.f32 %v726, 1.0
    %v764 = vlog2.pop %v763
    %v765 = vmul.f32 %v764, 0.6931472
    %v766 = vmul.f32 -0.5, %v726
    %v767 = vadd.f32 %v766, 1.0
    %v768 = vmul.f32 %v767, %v726
    %v769 = vand.u32 2147483647, %v726
    %vm770 = vcmp.lt.f32.partialorder %v769, 0.0004427343
    %v771 = vsel %vm770, %v768, %v765
    %v772 = vsub.f32 %v702, %v735
    %v773 = vsub.f32 %v703, %v744
    %v774 = vsub.f32 %v704, %v753
    %v775 = vsub.f32 %v705, %v762
    %v776 = vsub.f32 %v706, %v771
    %v777 = vmul.f32 %v597, %v772
    %v778 = vmul.f32 %v598, %v773
    %v779 = vmul.f32 %v599, %v774
    %v780 = vmul.f32 %v600, %v775
    %v781 = vmul.f32 %v601, %v776
    %v782 = vsel %vm88, %v777, 0.0
    %783 = vadd.xlane.f32.xlu0 %v782
    %v784 = vpop.xlane.xlu0 %783
    %v785 = vsel %vm88, %v778, 0.0
    %786 = vadd.xlane.f32.xlu0 %v785
    %v787 = vpop.xlane.xlu0 %786
    %v788 = vsel %vm88, %v779, 0.0
    %789 = vadd.xlane.f32.xlu0 %v788
    %v790 = vpop.xlane.xlu0 %789
    %v791 = vsel %vm88, %v780, 0.0
    %792 = vadd.xlane.f32.xlu0 %v791
    %v793 = vpop.xlane.xlu0 %792
    %v794 = vsel %vm88, %v781, 0.0
    %795 = vadd.xlane.f32.xlu0 %v794
    %v796 = vpop.xlane.xlu0 %795
    %v797 = vlaneseq
    %v798 = vshrl.u32 %v797, 7
    %v799 = vadd.s32 %v798, 8
    %v800 = vadd.s32 %v798, 16
    %v801 = vadd.s32 %v798, 24
    %v802 = vadd.s32 %v798, 32
    %v803 = vstv %s21
    %v804 = vadd.s32 %v803, %v798
    %v805 = vadd.s32 %v803, %v799
    %v806 = vadd.s32 %v803, %v800
    %v807 = vadd.s32 %v803, %v801
    %v808 = vadd.s32 %v803, %v802
    %vm809 = vcmp.lt.s32.totalorder %v804, 40
    %vm810 = vcmp.lt.s32.totalorder %v805, 40
    %vm811 = vcmp.lt.s32.totalorder %v806, 40
    %vm812 = vcmp.lt.s32.totalorder %v807, 40
    %vm813 = vcmp.lt.s32.totalorder %v808, 40
    %v814 = vadd.f32 %v692, %v784
    %v815 = vadd.f32 %v693, %v787
    %v816 = vadd.f32 %v694, %v790
    %v817 = vadd.f32 %v695, %v793
    %v818 = vadd.f32 %v696, %v796
    %v819 = vsel %vm809, %v814, 0.0
    %v820 = vsel %vm810, %v815, 0.0
    %v821 = vsel %vm811, %v816, 0.0
    %v822 = vsel %vm812, %v817, 0.0
    %v823 = vsel %vm813, %v818, 0.0
    %vm824 = vcmask 7168
    %v825 = vsel %vm824, %v819, 0.0
    %v826 = vsel %vm824, %v820, 0.0
    %v827 = vadd.f32 %v825, %v826
    %v828 = vsel %vm824, %v821, 0.0
    %v829 = vadd.f32 %v827, %v828
    %v830 = vsel %vm824, %v822, 0.0
    %v831 = vadd.f32 %v829, %v830
    %v832 = vsel %vm824, %v823, 0.0
    %v833 = vadd.f32 %v831, %v832
    %834 = vadd.xlane.f32.xlu0 %v833
    %v835 = vpop.xlane.xlu0 %834
    %v836 = vrot.slane %v835, 4
    %v837 = vadd.f32 %v835, %v836
    %v838 = vrot.slane %v837, 2
    %v839 = vadd.f32 %v837, %v838
    %v840 = vrot.slane %v839, 1
    %v841 = vadd.f32 %v839, %v840
    %s842 = vtos %v841
    %v843 = vstv %s842
    %vm844 = vcmask 0
    %845 = vst.msk [vmem:[#allocation2] sm:$0x1] %vm844, %v843
    // Predicated region
    $region22: #{tpu_custom_call.1} parent=1 // pred_check
      _
    $region23: #{tpu_custom_call.1} parent=1 // pred_check_branch
      %847 = sbr.rel (0) target = $region25
    $region24: #{tpu_custom_call.1} parent=1 // pred_region
      %849 = vsyncadd [#allocation3], 0
      %s851 = sshll.u32 [#allocation2], 4
      %s852 = int_to_ptr.vmem [resolvable:$true] %s851
      %s853 = sshll.u32 %s5, 4
      %s854 = int_to_ptr.hbm [resolvable:$true] %s853
      %856 = dma.vmem_to_hbm [thread:$0]  %s852, 16, %s854, [#allocation3]
    $region25: #{tpu_custom_call.1} parent=1 // pred_fallthru
      _
    // Predicated region
    $region26: #{tpu_custom_call.1} parent=1 // pred_check
      _
    $region27: #{tpu_custom_call.1} parent=1 // pred_check_branch
      %858 = sbr.rel (0) target = $region29
    $region28: #{tpu_custom_call.1} parent=1 // pred_region
      %860 = dma.done [#allocation3], 16
    $region29: #{tpu_custom_call.1} parent=1 // pred_fallthru
      _
    %861 = vsyncpa [#allocation3], 1

</llo_original>
